<compile_context>
chip_gen: v6e
topology: v6e:2x2x1
jax: 0.10.0
libtpu: 0.0.40
codegen_flags: <defaults>
</compile_context>

<pallas_src>
import jax
import jax.numpy as jnp
from jax.experimental import pallas as pl
from jax.experimental.pallas import tpu as pltpu

_MIB = 1024 * 1024


def _simple_gate_kernel(x_ref, o_ref):
    # x_ref: (b_n, 2, t_r, L) -- the two channel halves at matching offsets.
    # o_ref: (b_n, t_r, L)
    x = x_ref[...]
    o_ref[...] = x[:, 0] * x[:, 1]


def _round_up(v: int, m: int) -> int:
    return ((v + m - 1) // m) * m


def _vmem_info():
    """Returns (physical VMEM bytes, double-buffered block budget in bytes)."""
    try:
        phys = int(pltpu.get_tpu_info().vmem_capacity_bytes)
    except Exception:  # conservative fallback if hardware query is unavailable
        phys = 64 * _MIB
    # Target ~24 MiB of double-buffered blocks (8192 f32 rows of 3x128 lanes),
    # never more than 3/8 of physical VMEM (v7x: 64 MiB -> 24 MiB budget;
    # v5e/v6e: 128 MiB -> the 24 MiB cap applies).
    budget = min(24 * _MIB, (phys * 3) // 8)
    return phys, budget


def simple_gate(x: jax.Array) -> jax.Array:
    """SimpleGate: x.chunk(2, dim=1) -> x1 * x2.  x: (N, C, H, W), C even."""
    n, c, h, w = x.shape
    assert c % 2 == 0, "SimpleGate requires an even channel count"
    c_half = c // 2
    f = c_half * h * w  # flat size of each channel half per batch element
    itemsize = jnp.dtype(x.dtype).itemsize

    if f % 128 == 0:
        # Fast path: pack each half as (R, 128) -> dense (8,128) tiles and
        # unmasked, lane-dense loads/stores for any channel count.
        r_dim, l_dim = f // 128, 128
    else:
        # Channel-major fallback: (c_half, h*w) blocks keep full sublane
        # density whenever c_half >= 8; only lanes are masked.
        # TODO(synk): pathological fallback (huge odd h*w) can still overshoot
        # the VMEM budget with an 8-row minimum block; split bulk+tail in XLA
        # if that ever matters in practice.
        r_dim, l_dim = c_half, h * w

    phys_vmem, budget = _vmem_info()

    # Per-row VMEM footprint of the double-buffered blocks
    # (2 input halves + 1 output half, lanes padded to full 128-lane vregs).
    l_pad = _round_up(l_dim, 128)
    per_row = 2 * 3 * l_pad * itemsize
    tile_r = max(budget // per_row, 1)

    if tile_r >= r_dim:
        # Whole per-image half fits in the row budget: fold the batch axis
        # into the block so small feature maps still move MiB-scale steps.
        t_r = r_dim
        b_n = int(min(n, max(tile_r // max(r_dim, 1), 1)))
    else:
        # Tile the row axis; keep blocks a multiple of 8 sublanes.
        t_r = max((tile_r // 8) * 8, 8)
        b_n = 1

    grid = (pl.cdiv(n, b_n), pl.cdiv(r_dim, t_r))

    # Free (metadata-only) reshape: the channel halves are contiguous slabs,
    # so x_r[b, 0] / x_r[b, 1] alias x1[b] / x2[b] exactly.
    x_r = x.reshape(n, 2, r_dim, l_dim)

    # Explicit scoped-VMEM limit sized to the actual double-buffered working
    # set (covers v5e's 16 MiB scoped default), capped at 3/4 of physical.
    r_pad = _round_up(t_r, 8)
    working = 2 * b_n * 3 * r_pad * l_pad * itemsize
    vmem_limit = int(min(max(working + 8 * _MIB, 32 * _MIB), (phys_vmem * 3) // 4))

    out_r = pl.pallas_call(
        _simple_gate_kernel,
        out_shape=jax.ShapeDtypeStruct((n, r_dim, l_dim), x.dtype),
        grid_spec=pltpu.PrefetchScalarGridSpec(
            num_scalar_prefetch=0,
            grid=grid,
            in_specs=[
                pl.BlockSpec((b_n, 2, t_r, l_dim), lambda i, j: (i, 0, j, 0)),
            ],
            out_specs=pl.BlockSpec((b_n, t_r, l_dim), lambda i, j: (i, j, 0)),
        ),
        compiler_params=pltpu.CompilerParams(
            dimension_semantics=("parallel", "parallel"),
            vmem_limit_bytes=vmem_limit,
        ),
        cost_estimate=pl.CostEstimate(
            flops=n * f,
            transcendentals=0,
            bytes_accessed=3 * n * f * itemsize,
        ),
    )(x_r)

    return out_r.reshape(n, c_half, h, w)


if __name__ == "__main__":
    key = jax.random.PRNGKey(0)
    # NCHW: batch=2, channels=4 (even -> halves of 2), spatial 16x16
    x = jax.random.normal(key, (2, 4, 16, 16), dtype=jnp.float32)

    out = simple_gate(x)
    jax.block_until_ready(out)

    # Reference check against plain JAX.
    x1, x2 = jnp.split(x, 2, axis=1)
    ref = x1 * x2
    assert out.shape == ref.shape, (out.shape, ref.shape)
    assert jnp.allclose(out, ref, atol=1e-6), "mismatch vs reference"

    print("KERNEL_OK")
</pallas_src>

<mosaic_0001>
module attributes {stable_mosaic.version = 11 : i64} {
  func.func @_simple_gate_kernel(%arg0: i32, %arg1: i32, %arg2: memref<2x2x4x128xf32, #tpu.memory_space<vmem>>, %arg3: memref<2x4x128xf32, #tpu.memory_space<vmem>>) attributes {dimension_semantics = [#tpu.dimension_semantics<parallel>, #tpu.dimension_semantics<parallel>], iteration_bounds = array<i64: 1, 1>, scalar_prefetch = 0 : i64, scratch_operands = 0 : i64, tpu.core_type = #tpu.core_type<tc>, window_params = [{transform_indices = @transform_0, window_bounds = array<i64: 2, 2, 4, 128>}, {transform_indices = @transform_1, window_bounds = array<i64: 2, 4, 128>}]} {
    %c0 = arith.constant 0 : index
    %c0_0 = arith.constant 0 : index
    %c0_1 = arith.constant 0 : index
    %c0_2 = arith.constant 0 : index
    %0 = vector.load %arg2[%c0, %c0_0, %c0_1, %c0_2] : memref<2x2x4x128xf32, #tpu.memory_space<vmem>>, vector<2x2x4x128xf32>
    %1 = vector.extract_strided_slice %0 {offsets = [0, 0, 0, 0], sizes = [2, 1, 4, 128], strides = [1, 1, 1, 1]} : vector<2x2x4x128xf32> to vector<2x1x4x128xf32>
    %2 = vector.shape_cast %1 : vector<2x1x4x128xf32> to vector<2x4x128xf32>
    %3 = vector.extract_strided_slice %0 {offsets = [0, 1, 0, 0], sizes = [2, 1, 4, 128], strides = [1, 1, 1, 1]} : vector<2x2x4x128xf32> to vector<2x1x4x128xf32>
    %4 = vector.shape_cast %3 : vector<2x1x4x128xf32> to vector<2x4x128xf32>
    %5 = arith.mulf %2, %4 : vector<2x4x128xf32>
    %c0_3 = arith.constant 0 : index
    %c0_4 = arith.constant 0 : index
    %c0_5 = arith.constant 0 : index
    %6 = vector.load %arg3[%c0_3, %c0_4, %c0_5] : memref<2x4x128xf32, #tpu.memory_space<vmem>>, vector<2x4x128xf32>
    tpu.vector_store %arg3[%c0_3, %c0_4, %c0_5], %5 {strides = array<i32>} : memref<2x4x128xf32, #tpu.memory_space<vmem>>, vector<2x4x128xf32>,
    return
  }
  func.func @transform_0(%arg0: i32, %arg1: i32) -> (i32, i32, i32, i32) {
    %c0_i32 = arith.constant 0 : i32
    %c0_i32_0 = arith.constant 0 : i32
    %c0_i32_1 = arith.constant 0 : i32
    return %arg0, %c0_i32, %arg1, %c0_i32_0 : i32, i32, i32, i32
  }
  func.func @transform_1(%arg0: i32, %arg1: i32) -> (i32, i32, i32) {
    %c0_i32 = arith.constant 0 : i32
    %c0_i32_0 = arith.constant 0 : i32
    return %arg0, %arg1, %c0_i32 : i32, i32, i32
  }
}

</mosaic_0001>

<llo_original>
// kernel: tpu_custom_call.1
$region0: #{tpu_custom_call.1}
  #allocation0 [shape = 'u32[]', space=smem, size = 0x4, offset = 0x4, fixed_abs, tag = 'smem constant byte address 0x4 - core index']
  #allocation1 [shape = 'u32[144,128]{1,0:T(1,128)}', space=vmem, size = 0x12000, scoped, tag = 'internal scratch']
  %s0 = inlined_call_operand.hbm [shape: f32[2,2,4,128], index: 0, kind: input, shape index: {}]
  %s1 = inlined_call_operand.hbm [shape: f32[2,4,128], index: 1, kind: output, shape index: {}]
  %s2 = sld [smem:[#allocation0]]
  $region18: #{tpu_custom_call.1} parent=0
    _
  %s4 = ssub.s32 1, %s2
  %s5 = scalar_select 0, %s4, %s2
  $region1: #{tpu_custom_call.1} parent=0
    #allocation2 [shape = 'u8[8192]{0}', space=vmem, size = 0x2000, scoped, tag = 'input window, operand 0, single buffered']
    #allocation3 [shape = 's32[1]{0}', space=sflag, size = 0x4, scoped, tag = 'scoped memory for tpu_custom_call.1']
    #allocation4 [shape = 's32[1]{0}', space=sflag, size = 0x4, scoped, tag = 'scoped memory for tpu_custom_call.1']
    #allocation5 [shape = 'u8[4096]{0}', space=vmem, size = 0x1000, scoped, tag = 'output window, operand 0, single buffered']
    %6 = vsyncpa [#allocation3], 0
    %7 = vsyncpa [#allocation4], 0
    // Predicated region
    $region2: #{tpu_custom_call.1} parent=1 // pred_check
      _
    $region3: #{tpu_custom_call.1} parent=1 // pred_check_branch
      %9 = sbr.rel (0) target = $region5
    $region4: #{tpu_custom_call.1} parent=1 // pred_region
      %s11 = ssub.s32 256, 256
      %12 = vsyncadd [#allocation3], %s11
      %s13 = sshll.u32 [#allocation2], 4
      %s14 = int_to_ptr.vmem [resolvable:$true] %s13
      %19 = dma.hbm_to_vmem [thread:$0]  %s0, 256, %s14, [#allocation3], 64, 64, 4
    $region5: #{tpu_custom_call.1} parent=1 // pred_fallthru
      _
    // Predicated region
    $region6: #{tpu_custom_call.1} parent=1 // pred_check
      _
    $region7: #{tpu_custom_call.1} parent=1 // pred_check_branch
      %21 = sbr.rel (0) target = $region9
    $region8: #{tpu_custom_call.1} parent=1 // pred_region
      %22 = dma.done [#allocation3], 256
    $region9: #{tpu_custom_call.1} parent=1 // pred_fallthru
      _
    %v23 = vld [vmem:[#allocation2] sm:$0xf]
    %v24 = vld [vmem:[#allocation2 + $0x4] sm:$0xf]
    %v25 = vld [vmem:[#allocation2 + $0x8] sm:$0xf]
    %v26 = vld [vmem:[#allocation2 + $0xc] sm:$0xf]
    %v27 = vmul.f32 %v23, %v24
    %v28 = vmul.f32 %v25, %v26
    %29 = vst [vmem:[#allocation5] sm:$0xf] %v27
    %30 = vst [vmem:[#allocation5 + $0x4] sm:$0xf] %v28
    // Predicated region
    $region10: #{tpu_custom_call.1} parent=1 // pred_check
      _
    $region11: #{tpu_custom_call.1} parent=1 // pred_check_branch
      %32 = sbr.rel (0) target = $region13
    $region12: #{tpu_custom_call.1} parent=1 // pred_region
      %s34 = ssub.s32 128, 128
      %35 = vsyncadd [#allocation4], %s34
      %s36 = sshll.u32 [#allocation5], 4
      %s37 = int_to_ptr.vmem [resolvable:$true] %s36
      %42 = dma.vmem_to_hbm [thread:$0]  %s37, 128, %s1, [#allocation4], 64, 64, 4
    $region13: #{tpu_custom_call.1} parent=1 // pred_fallthru
      _
    // Predicated region
    $region14: #{tpu_custom_call.1} parent=1 // pred_check
      _
    $region15: #{tpu_custom_call.1} parent=1 // pred_check_branch
      %44 = sbr.rel (0) target = $region17
    $region16: #{tpu_custom_call.1} parent=1 // pred_region
      %45 = dma.done [#allocation4], 128
    $region17: #{tpu_custom_call.1} parent=1 // pred_fallthru
      _
    %46 = vsyncpa [#allocation3], 1
    %47 = vsyncpa [#allocation4], 1

</llo_original>
